<compile_context>
chip_gen: v7x
topology: tpu7x:2x2x1
jax: 0.10.0
libtpu: 0.0.40
codegen_flags: <defaults>
</compile_context>

<pallas_src>
import functools

import jax
import jax.numpy as jnp
from jax.experimental import pallas as pl
from jax.experimental.pallas import tpu as pltpu

# deterministic "randomized" postprocess hyper-parameters (Compress option lists)
COMPRESS_THRESHOLD = 0.5
COMPRESS_RATIO = 0.5


# ---------------------------------------------------------------------------
# Kernel 1: per-frame RMS ("volume" feature), gridded over frames.
# ---------------------------------------------------------------------------
def _rms_kernel(frames_ref, rms_ref):
    """frames_ref : [TF, frame_len]  audio frames (lane-dense, frame_len >= 128 typ.)
       rms_ref    : [TF, 1]          per-frame RMS column
    """
    x = frames_ref[...]
    rms_ref[...] = jnp.sqrt(jnp.mean(x * x, axis=-1, keepdims=True))


# ---------------------------------------------------------------------------
# Kernel 2: noise modulation (the only large, memory-bound stage), gridded.
# ---------------------------------------------------------------------------
def _modulate_kernel(post_ref, noise_ref, mod_ref, *, tf, compute_bf16):
    """post_ref  : [F_pad, 1]  compressed feature column, f32, VMEM-resident
       noise_ref : [TF, S]     noise tile (bf16 or f32)
       mod_ref   : [TF, S]     modulated noise tile (mod_dtype)
    """
    i = pl.program_id(0)
    start = pl.multiple_of(i * tf, tf)
    p = post_ref[pl.ds(start, tf), :]                       # [TF, 1] f32
    n = noise_ref[...]                                      # [TF, S]
    if compute_bf16:
        # bf16 end-to-end: halves vld/vst vreg traffic on bf16-VALU chips.
        mod_ref[...] = (p.astype(jnp.bfloat16) * n.astype(jnp.bfloat16)).astype(mod_ref.dtype)
    else:
        mod_ref[...] = (p * n.astype(jnp.float32)).astype(mod_ref.dtype)


# ---------------------------------------------------------------------------
# Tiling helper: biggest row-tile under a conservative VMEM budget, but always
# >= 2 grid steps when the stage moves non-trivial bytes (keeps both v7x TCs busy).
# ---------------------------------------------------------------------------
def _choose_row_tile(n_rows, in_row_bytes, out_row_bytes,
                     budget_bytes=12 << 20, split_threshold_bytes=2 << 20):
    if n_rows <= 8:
        return n_rows
    per_row = 2 * (in_row_bytes + out_row_bytes)        # 2x: auto double-buffering
    tf = (budget_bytes // per_row) // 8 * 8
    tf = max(8, min(n_rows, tf))
    total = n_rows * (in_row_bytes + out_row_bytes)
    if tf >= n_rows and total > split_threshold_bytes:
        # force >=2 "parallel" grid steps so v7x can shard across its 2 TensorCores
        tf = (((n_rows + 1) // 2) + 7) // 8 * 8
        if tf >= n_rows:
            tf = ((n_rows - 1) // 8) * 8
        tf = max(8, tf)
    return tf


def _resample_linear(x, n_out):
    """2-tap linear-interpolation resample of a 1-D signal (stands in for
    scipy.signal.resample). O(n_out) work, no dense matrix."""
    n_in = x.shape[0]
    if n_in == 1:
        return jnp.broadcast_to(x, (n_out,))
    pos = jnp.linspace(0.0, float(n_in - 1), n_out)
    lo = jnp.floor(pos).astype(jnp.int32)
    hi = jnp.minimum(lo + 1, n_in - 1)
    frac = (pos - lo.astype(jnp.float32)).astype(jnp.float32)
    return x[lo] * (1.0 - frac) + x[hi] * frac


def random_patch_forward(audio, noise, *, dur, fps, frame_len,
                         threshold=COMPRESS_THRESHOLD, ratio=COMPRESS_RATIO,
                         mod_dtype=None):
    """JAX wrapper reproducing RandomPatch.forward for the fixed config.

    audio : [T] float32 mono audio (T divisible by frame_len)
    noise : [F_out, 1, size, size] noise (NCHW, f32 or bf16)
    mod_dtype : dtype of the modulated-noise output (None -> noise.dtype).
                bf16 is a precision/bandwidth trade-off flag, not a requirement.
    Returns (modulated_noise [F_out,1,size,size], audio_feature [F_out] f32,
             audio_postprocessed [F_out] f32).
    """
    T = audio.shape[0]
    assert T % frame_len == 0
    f_in = T // frame_len
    f_out = int(round(dur * fps))
    fo, c, h, w_sz = noise.shape
    assert fo == f_out and c == 1
    s = h * w_sz
    mod_dtype = noise.dtype if mod_dtype is None else jnp.dtype(mod_dtype)

    # ---- feature stage 1: per-frame RMS, Pallas, tiled over frames ----
    # [f_in, frame_len] framing is a free reshape (no transpose, lane-dense loads).
    frames = audio.astype(jnp.float32).reshape(f_in, frame_len)
    tfi = _choose_row_tile(f_in, frame_len * 4, 4)
    rms = pl.pallas_call(
        _rms_kernel,
        out_shape=jax.ShapeDtypeStruct((f_in, 1), jnp.float32),
        grid_spec=pltpu.PrefetchScalarGridSpec(
            num_scalar_prefetch=0,
            grid=(pl.cdiv(f_in, tfi),),
            in_specs=[pl.BlockSpec((tfi, frame_len), lambda i: (i, 0))],
            out_specs=pl.BlockSpec((tfi, 1), lambda i: (i, 0))),
        compiler_params=pltpu.CompilerParams(
            dimension_semantics=("parallel",),
            vmem_limit_bytes=32 << 20),
    )(frames)[:, 0]                                            # [f_in]

    # ---- feature stage 2 (tiny, O(f_in + f_out)): normalize, resample, compress ----
    # Plain XLA on purpose (per perf review): avoids the O(f_in*f_out) resample
    # matrix and an extra pallas_call launch; exact division (no approx recip).
    rms = rms - jnp.min(rms)
    rms = rms / (jnp.max(rms) + jnp.float32(1e-8))
    feat = _resample_linear(rms, f_out)                        # [f_out] audio_feature
    post = jnp.where(feat > threshold,
                     threshold + (feat - threshold) * ratio,
                     feat)                                     # [f_out] audio_postprocessed

    # ---- modulation stage: post[:, None] * noise, Pallas, tiled over frames ----
    noise_flat = noise.reshape(f_out, s)                       # keep input dtype (bf16 halves reads)
    s_pad = s
    if s < 128:
        # lane-dense output guard for tiny patches (avoids masked vst.msk cliff);
        # the whole array is tiny in this regime so the pad/slice cost is negligible.
        s_pad = 128
        noise_flat = jnp.pad(noise_flat, ((0, 0), (0, s_pad - s)))

    nb = jnp.dtype(noise_flat.dtype).itemsize
    ob = jnp.dtype(mod_dtype).itemsize
    tf = _choose_row_tile(f_out, s_pad * nb, s_pad * ob)
    grid_f = pl.cdiv(f_out, tf)
    f_pad = grid_f * tf

    post_col = post.reshape(f_out, 1).astype(jnp.float32)
    if f_pad != f_out:
        post_col = jnp.pad(post_col, ((0, f_pad - f_out), (0, 0)))

    compute_bf16 = bool(noise_flat.dtype == jnp.bfloat16 and mod_dtype == jnp.bfloat16)

    mod = pl.pallas_call(
        functools.partial(_modulate_kernel, tf=tf, compute_bf16=compute_bf16),
        out_shape=jax.ShapeDtypeStruct((f_out, s_pad), mod_dtype),
        grid_spec=pltpu.PrefetchScalarGridSpec(
            num_scalar_prefetch=0,
            grid=(grid_f,),
            in_specs=[
                # constant block index -> fetched into VMEM once, sliced in-kernel
                pl.BlockSpec((f_pad, 1), lambda i: (0, 0)),
                pl.BlockSpec((tf, s_pad), lambda i: (i, 0)),
            ],
            out_specs=pl.BlockSpec((tf, s_pad), lambda i: (i, 0))),
        compiler_params=pltpu.CompilerParams(
            dimension_semantics=("parallel",),      # shards grid across v7x's 2 TCs
            vmem_limit_bytes=32 << 20),
    )(post_col, noise_flat)

    if s_pad != s:
        mod = mod[:, :s]
    return mod.reshape(f_out, 1, h, w_sz), feat, post


if __name__ == "__main__":
    key = jax.random.PRNGKey(0)
    k_audio, k_noise = jax.random.split(key)

    # Small deterministic example shapes.
    sr = 1024
    dur = 8.0
    fps = 8
    frame_len = 256
    size = 16

    T = int(sr * dur)                       # 8192 audio samples
    f_out = int(round(dur * fps))           # 64 video frames

    audio = jax.random.normal(k_audio, (T,), dtype=jnp.float32)
    # noise kept in bf16 + bf16 output: minimizes HBM bytes of the mem-bound stage
    noise = jax.random.normal(
        k_noise, (f_out, 1, size, size), dtype=jnp.float32).astype(jnp.bfloat16)

    mod, feat, post = random_patch_forward(
        audio, noise, dur=dur, fps=fps, frame_len=frame_len,
        mod_dtype=jnp.bfloat16)
    jax.block_until_ready((mod, feat, post))

    # Pure-JAX reference check of the fused pipeline.
    f_in = T // frame_len
    frames = audio.reshape(f_in, frame_len)
    rms_ref = jnp.sqrt(jnp.mean(frames * frames, axis=1))
    rms_ref = rms_ref - rms_ref.min()
    rms_ref = rms_ref / (rms_ref.max() + 1e-8)
    feat_ref = _resample_linear(rms_ref, f_out)
    post_ref = jnp.where(feat_ref > COMPRESS_THRESHOLD,
                         COMPRESS_THRESHOLD + (feat_ref - COMPRESS_THRESHOLD) * COMPRESS_RATIO,
                         feat_ref)
    mod_ref = (post_ref[:, None, None, None]
               * noise.astype(jnp.float32).reshape(f_out, 1, size, size))

    # feature path is exact (no approx reciprocal); modulated noise is bf16 by choice
    assert jnp.allclose(feat, feat_ref, atol=1e-5)
    assert jnp.allclose(post, post_ref, atol=1e-5)
    assert jnp.allclose(mod.astype(jnp.float32), mod_ref, atol=5e-2)

    print("KERNEL_OK")
</pallas_src>

<mosaic_0001>
module attributes {stable_mosaic.version = 11 : i64} {
  func.func @_rms_kernel(%arg0: i32, %arg1: memref<32x256xf32, #tpu.memory_space<vmem>>, %arg2: memref<32x1xf32, #tpu.memory_space<vmem>>) attributes {dimension_semantics = [#tpu.dimension_semantics<parallel>], iteration_bounds = array<i64: 1>, scalar_prefetch = 0 : i64, scratch_operands = 0 : i64, tpu.core_type = #tpu.core_type<tc>, window_params = [{transform_indices = @transform_0, window_bounds = array<i64: 32, 256>}, {transform_indices = @transform_1, window_bounds = array<i64: 32, 1>}]} {
    %c0 = arith.constant 0 : index
    %c0_0 = arith.constant 0 : index
    %0 = vector.load %arg1[%c0, %c0_0] : memref<32x256xf32, #tpu.memory_space<vmem>>, vector<32x256xf32>
    %1 = arith.mulf %0, %0 : vector<32x256xf32>
    %cst = arith.constant dense<0.000000e+00> : vector<32xf32>
    %2 = vector.multi_reduction <add>, %1, %cst [1] : vector<32x256xf32> to vector<32xf32>
    %3 = vector.shape_cast %2 : vector<32xf32> to vector<32x1xf32>
    %cst_1 = arith.constant 2.560000e+02 : f32
    %4 = vector.broadcast %cst_1 : f32 to vector<32x1xf32>
    %5 = arith.divf %3, %4 : vector<32x1xf32>
    %6 = math.sqrt %5 : vector<32x1xf32>
    %c0_2 = arith.constant 0 : index
    %c0_3 = arith.constant 0 : index
    %7 = vector.load %arg2[%c0_2, %c0_3] : memref<32x1xf32, #tpu.memory_space<vmem>>, vector<32x1xf32>
    tpu.vector_store %arg2[%c0_2, %c0_3], %6 {strides = array<i32>} : memref<32x1xf32, #tpu.memory_space<vmem>>, vector<32x1xf32>,
    return
  }
  func.func @transform_0(%arg0: i32) -> (i32, i32) {
    %c0_i32 = arith.constant 0 : i32
    %c0_i32_0 = arith.constant 0 : i32
    return %arg0, %c0_i32 : i32, i32
  }
  func.func @transform_1(%arg0: i32) -> (i32, i32) {
    %c0_i32 = arith.constant 0 : i32
    %c0_i32_0 = arith.constant 0 : i32
    return %arg0, %c0_i32 : i32, i32
  }
}

</mosaic_0001>

<llo_original>
// kernel: tpu_custom_call.1
$region0: #{tpu_custom_call.1}
  #allocation0 [shape = 'u32[]', space=smem, size = 0x4, offset = 0x4, fixed_abs, tag = 'smem constant byte address 0x4 - core index']
  #allocation1 [shape = 'u32[144,128]{1,0:T(1,128)}', space=vmem, size = 0x12000, scoped, tag = 'internal scratch']
  %s0 = inlined_call_operand.hbm [shape: f32[32,256], index: 0, kind: input, shape index: {}]
  %s1 = inlined_call_operand.vmem [shape: f32[32,1], index: 1, kind: output, shape index: {}]
  %s2 = sld [smem:[#allocation0]]
  $region18: #{tpu_custom_call.1} parent=0
    _
  %s4 = ssub.s32 1, %s2
  %s5 = scalar_select 0, %s4, %s2
  $region1: #{tpu_custom_call.1} parent=0
    #allocation2 [shape = 'u8[32768]{0}', space=vmem, size = 0x8000, scoped, tag = 'input window, operand 0, single buffered']
    #allocation3 [shape = 's32[1]{0}', space=sflag, size = 0x4, scoped, tag = 'scoped memory for tpu_custom_call.1']
    %6 = vsyncpa [#allocation3], 0
    // Predicated region
    $region2: #{tpu_custom_call.1} parent=1 // pred_check
      _
    $region3: #{tpu_custom_call.1} parent=1 // pred_check_branch
      %8 = sbr.rel (0) target = $region5
    $region4: #{tpu_custom_call.1} parent=1 // pred_region
      %s10 = ssub.s32 1024, 1024
      %11 = vsyncadd [#allocation3], %s10
      %s12 = sshll.u32 [#allocation2], 4
      %s13 = int_to_ptr.vmem [resolvable:$true] %s12
      %18 = dma.hbm_to_vmem [thread:$0]  %s0, 1024, %s13, [#allocation3], 256, 256, 16
    $region5: #{tpu_custom_call.1} parent=1 // pred_fallthru
      _
    // Predicated region
    $region6: #{tpu_custom_call.1} parent=1 // pred_check
      _
    $region7: #{tpu_custom_call.1} parent=1 // pred_check_branch
      %20 = sbr.rel (0) target = $region9
    $region8: #{tpu_custom_call.1} parent=1 // pred_region
      %21 = dma.done [#allocation3], 1024
    $region9: #{tpu_custom_call.1} parent=1 // pred_fallthru
      _
    %v22 = vld [vmem:[#allocation2] sm:$0xff]
    %v23 = vld [vmem:[#allocation2 + $0x8] sm:$0xff]
    %v24 = vld [vmem:[#allocation2 + $0x10] sm:$0xff]
    %v25 = vld [vmem:[#allocation2 + $0x18] sm:$0xff]
    %v26 = vld [vmem:[#allocation2 + $0x20] sm:$0xff]
    %v27 = vld [vmem:[#allocation2 + $0x28] sm:$0xff]
    %v28 = vld [vmem:[#allocation2 + $0x30] sm:$0xff]
    %v29 = vld [vmem:[#allocation2 + $0x38] sm:$0xff]
    %v30 = vmul.f32 %v22, %v22
    %v31 = vmul.f32 %v23, %v23
    %v32 = vmul.f32 %v24, %v24
    %v33 = vmul.f32 %v25, %v25
    %v34 = vmul.f32 %v26, %v26
    %v35 = vmul.f32 %v27, %v27
    %v36 = vmul.f32 %v28, %v28
    %v37 = vmul.f32 %v29, %v29
    %v38 = vadd.f32 %v30, %v31
    %39 = vadd.xlane.f32.xlu0 %v38
    %v40 = vpop.xlane.xlu0 %39
    %v41 = vadd.f32 %v32, %v33
    %42 = vadd.xlane.f32.xlu0 %v41
    %v43 = vpop.xlane.xlu0 %42
    %v44 = vadd.f32 %v34, %v35
    %45 = vadd.xlane.f32.xlu0 %v44
    %v46 = vpop.xlane.xlu0 %45
    %v47 = vadd.f32 %v36, %v37
    %48 = vadd.xlane.f32.xlu0 %v47
    %v49 = vpop.xlane.xlu0 %48
    %v50 = vrcp.pop 256.0
    %v51 = vmul.f32 %v40, %v50
    %v52 = vmul.f32 %v43, %v50
    %v53 = vmul.f32 %v46, %v50
    %v54 = vmul.f32 %v49, %v50
    %v55 = vrsqrt.pop %v51
    %v56 = vmul.f32 %v51, %v55
    %vm57 = vcmp.eq.f32.partialorder %v51, inf
    %v58 = vsel %vm57, %v51, %v56
    %vm59 = vcmp.eq.f32.partialorder %v51, 0.0
    %v60 = vand.u32 %v51, 2147483648
    %v61 = vsel %vm59, %v60, %v58
    %v62 = vrsqrt.pop %v52
    %v63 = vmul.f32 %v52, %v62
    %vm64 = vcmp.eq.f32.partialorder %v52, inf
    %v65 = vsel %vm64, %v52, %v63
    %vm66 = vcmp.eq.f32.partialorder %v52, 0.0
    %v67 = vand.u32 %v52, 2147483648
    %v68 = vsel %vm66, %v67, %v65
    %v69 = vrsqrt.pop %v53
    %v70 = vmul.f32 %v53, %v69
    %vm71 = vcmp.eq.f32.partialorder %v53, inf
    %v72 = vsel %vm71, %v53, %v70
    %vm73 = vcmp.eq.f32.partialorder %v53, 0.0
    %v74 = vand.u32 %v53, 2147483648
    %v75 = vsel %vm73, %v74, %v72
    %v76 = vrsqrt.pop %v54
    %v77 = vmul.f32 %v54, %v76
    %vm78 = vcmp.eq.f32.partialorder %v54, inf
    %v79 = vsel %vm78, %v54, %v77
    %vm80 = vcmp.eq.f32.partialorder %v54, 0.0
    %v81 = vand.u32 %v54, 2147483648
    %v82 = vsel %vm80, %v81, %v79
    %vm83 = vcmask 7168
    %84 = vst.msk [vmem:[%s1] sm:$0xff] %vm83, %v61
    %85 = vst.msk [vmem:[%s1 + $0x8] sm:$0xff] %vm83, %v68
    %86 = vst.msk [vmem:[%s1 + $0x10] sm:$0xff] %vm83, %v75
    %87 = vst.msk [vmem:[%s1 + $0x18] sm:$0xff] %vm83, %v82
    // Predicated region
    $region10: #{tpu_custom_call.1} parent=1 // pred_check
      _
    $region11: #{tpu_custom_call.1} parent=1 // pred_check_branch
      %89 = sbr.rel (0) target = $region13
    $region12: #{tpu_custom_call.1} parent=1 // pred_region
      _
    $region13: #{tpu_custom_call.1} parent=1 // pred_fallthru
      _
    // Predicated region
    $region14: #{tpu_custom_call.1} parent=1 // pred_check
      _
    $region15: #{tpu_custom_call.1} parent=1 // pred_check_branch
      %91 = sbr.rel (0) target = $region17
    $region16: #{tpu_custom_call.1} parent=1 // pred_region
      _
    $region17: #{tpu_custom_call.1} parent=1 // pred_fallthru
      _
    %92 = vsyncpa [#allocation3], 1

</llo_original>
